<compile_context>
chip_gen: v7x
topology: tpu7x:2x2x1
jax: 0.10.0
libtpu: 0.0.40
codegen_flags: <defaults>
</compile_context>

<pallas_src>
import functools

import jax
import jax.numpy as jnp
from jax.experimental import pallas as pl
from jax.experimental.pallas import tpu as pltpu


def _round_up(x, m):
    return ((x + m - 1) // m) * m


def _default_vmem_limit_bytes():
    """Generation-aware VMEM limit (leave Mosaic headroom on v7x, use most of v5e/v6e)."""
    cap = None
    try:
        info_fn = getattr(pltpu, "get_tpu_info", None)
        if info_fn is not None:
            cap = getattr(info_fn(), "vmem_capacity_bytes", None)
    except Exception:
        cap = None
    if cap is None:
        cap = 64 * 1024 * 1024                      # conservative fallback (v7x-sized)
    if cap <= 64 * 1024 * 1024:
        return min(cap, 48 * 1024 * 1024)           # v7x: never ask for the full 64 MiB
    return min(cap, 112 * 1024 * 1024)              # v5e/v6e: use most of 128 MiB


def _default_mxu_dtype():
    """bf16 MXU inputs on v6e/v7x (f32 accumulation); f32 elsewhere."""
    try:
        kind = jax.devices()[0].device_kind.lower()
    except Exception:
        return jnp.float32
    if ("v6" in kind) or ("v7" in kind):
        return jnp.bfloat16
    return jnp.float32


def _single_k_kernel(h_ref, w_ref, b_ref, o_ref, *, cdt):
    """K-grid == 1 fast path: weight + bias VMEM-resident, no accumulator scratch."""
    acc = jnp.dot(h_ref[...].astype(cdt), w_ref[...],
                  preferred_element_type=jnp.float32)
    o_ref[...] = jnp.maximum(acc + b_ref[...], 0.0).astype(o_ref.dtype)


def _multi_k_kernel(h_ref, w_ref, b_ref, o_ref, acc_ref, *, cdt):
    """K-tiled path with f32 accumulator (init / finalize via pl.when)."""
    k = pl.program_id(1)

    @pl.when(k == 0)
    def _():
        acc_ref[...] = jnp.zeros_like(acc_ref)

    acc_ref[...] += jnp.dot(h_ref[...].astype(cdt), w_ref[...],
                            preferred_element_type=jnp.float32)

    @pl.when(k == pl.num_programs(1) - 1)
    def _():
        o_ref[...] = jnp.maximum(acc_ref[...] + b_ref[...], 0.0).astype(o_ref.dtype)


def node_apply(h, w, b, *, tile_n=1024, mxu_dtype=None, vmem_limit_bytes=None,
               k_tile=None):
    """ReLU(h @ w.T + b), matching torch nn.Linear(in_feats, out_feats) + ReLU.

    h: (N, in_feats) float32
    w: (out_feats, in_feats)   (PyTorch nn.Linear weight layout)
    b: (out_feats,)
    mxu_dtype: MXU-input dtype; None -> auto (bf16 on v6e/v7x, f32 otherwise).
               Accumulation, bias add and ReLU are always float32.
    k_tile: force a K tile size (debug/testing of the K-tiled path).
    """
    n, in_feats = h.shape
    out_feats = w.shape[0]
    out_dtype = h.dtype

    cdt = jnp.dtype(_default_mxu_dtype() if mxu_dtype is None else mxu_dtype)
    w_bytes = cdt.itemsize
    min_sub = 16 if cdt == jnp.dtype(jnp.bfloat16) else 8

    if vmem_limit_bytes is None:
        vmem_limit_bytes = _default_vmem_limit_bytes()
    budget = int(0.6 * vmem_limit_bytes)

    # Lane-dense padding of feature axes only (128 granularity; rows never padded).
    out_p = _round_up(out_feats, 128)
    in_p = _round_up(in_feats, 128)

    # ---- node (M) tile ------------------------------------------------------
    if n <= tile_n:
        # Split in two when there is enough work so both v7x TensorCores are fed.
        tile_n = _round_up((n + 1) // 2, min_sub) if n >= 512 else n
    else:
        tile_n = max(min_sub, (tile_n // min_sub) * min_sub)

    def fp_resident(tn):
        return (2 * tn * in_p * 4                 # h tiles (f32 in VMEM, cast in-kernel)
                + 2 * in_p * out_p * w_bytes      # resident weight
                + 2 * out_p * 4                   # bias
                + 2 * tn * out_p * 4)             # output tiles

    def fp_tiled(tn, tk):
        return (2 * tn * tk * 4 + 2 * tk * out_p * w_bytes + 2 * out_p * 4
                + 2 * tn * out_p * 4 + tn * out_p * 4)   # + acc scratch

    # ---- K tiling: prefer a fully resident weight (K-grid == 1) -------------
    if k_tile is not None:
        resident = False
        tile_k = min(in_p, _round_up(int(k_tile), 128))
        if in_p % tile_k != 0:
            tile_k = 128
    else:
        resident = (2 * in_p * out_p * w_bytes) <= budget // 2
        tile_k = in_p

    if resident:
        while tile_n > 256 and fp_resident(tile_n) > budget:
            tile_n = max(256, (tile_n // 2 // min_sub) * min_sub)
        resident = fp_resident(tile_n) <= budget

    if not resident:
        if k_tile is None:
            tile_k = 128
            for cand in (512, 384, 256, 128):
                if cand <= in_p and in_p % cand == 0:
                    tile_k = cand
                    break
        while tile_n > min_sub and fp_tiled(tile_n, tile_k) > budget:
            tile_n = max(min_sub, (tile_n // 2 // min_sub) * min_sub)

    # ---- operand prep (feature-axis padding only; K padding must be zeros) ---
    hp = h if in_p == in_feats else jnp.pad(h, ((0, 0), (0, in_p - in_feats)))
    wt = w.T
    if (in_p != in_feats) or (out_p != out_feats):
        wt = jnp.pad(wt, ((0, in_p - in_feats), (0, out_p - out_feats)))
    wt = wt.astype(cdt)                            # small tensor: wrapper cast is cheap
    bp = jnp.pad(b.astype(jnp.float32), (0, out_p - out_feats)).reshape(1, out_p)

    cost = pl.CostEstimate(
        flops=2 * n * in_feats * out_feats,
        transcendentals=0,
        bytes_accessed=(h.size * h.dtype.itemsize + wt.size * cdt.itemsize
                        + bp.size * 4 + n * out_p * jnp.dtype(out_dtype).itemsize),
    )

    n_tiles = pl.cdiv(n, tile_n)

    if resident:
        grid = (n_tiles,)
        kernel = functools.partial(_single_k_kernel, cdt=cdt)
        in_specs = [
            pl.BlockSpec((tile_n, in_p), lambda i: (i, 0)),      # h node tile
            pl.BlockSpec((in_p, out_p), lambda i: (0, 0)),       # weight (resident)
            pl.BlockSpec((1, out_p), lambda i: (0, 0)),          # bias (resident)
        ]
        out_specs = pl.BlockSpec((tile_n, out_p), lambda i: (i, 0))
        scratch_shapes = []
        dim_sem = ("parallel",)
    else:
        grid = (n_tiles, in_p // tile_k)                          # K (reduction) axis last
        kernel = functools.partial(_multi_k_kernel, cdt=cdt)
        in_specs = [
            pl.BlockSpec((tile_n, tile_k), lambda i, k: (i, k)),
            pl.BlockSpec((tile_k, out_p), lambda i, k: (k, 0)),
            pl.BlockSpec((1, out_p), lambda i, k: (0, 0)),
        ]
        out_specs = pl.BlockSpec((tile_n, out_p), lambda i, k: (i, 0))
        scratch_shapes = [pltpu.VMEM((tile_n, out_p), jnp.float32)]
        dim_sem = ("parallel", "arbitrary")

    out = pl.pallas_call(
        kernel,
        out_shape=jax.ShapeDtypeStruct((n, out_p), out_dtype),
        grid=grid,
        in_specs=in_specs,
        out_specs=out_specs,
        scratch_shapes=scratch_shapes,
        compiler_params=pltpu.CompilerParams(
            dimension_semantics=dim_sem,
            vmem_limit_bytes=vmem_limit_bytes),
        cost_estimate=cost,
    )(hp, wt, bp)

    if out_p != out_feats:
        out = out[:, :out_feats]
    return out


if __name__ == "__main__":
    key = jax.random.PRNGKey(0)

    def make_case(key, num_nodes, in_feats, out_feats):
        k_h, k_w, k_b = jax.random.split(key, 3)
        bound = 1.0 / (in_feats ** 0.5)   # PyTorch nn.Linear default init range
        w = jax.random.uniform(k_w, (out_feats, in_feats), jnp.float32, -bound, bound)
        b = jax.random.uniform(k_b, (out_feats,), jnp.float32, -bound, bound)
        h = jax.random.normal(k_h, (num_nodes, in_feats), jnp.float32)
        ref = jnp.maximum(h @ w.T + b, 0.0)
        return h, w, b, ref

    k1, k2, k3 = jax.random.split(key, 3)

    # Case 1: small aligned shapes (16 nodes, 32 -> 32 features).
    h, w, b, ref = make_case(k1, 16, 32, 32)
    out_f32 = jax.block_until_ready(node_apply(h, w, b, mxu_dtype=jnp.float32))
    assert out_f32.shape == (16, 32)
    assert jnp.allclose(out_f32, ref, atol=1e-5, rtol=1e-5)
    out_bf16 = jax.block_until_ready(node_apply(h, w, b, mxu_dtype=jnp.bfloat16))
    assert jnp.allclose(out_bf16, ref, atol=5e-2, rtol=5e-2)
    out_auto = jax.block_until_ready(node_apply(h, w, b))   # auto dtype (bf16 on v6e/v7x)
    assert jnp.allclose(out_auto, ref, atol=5e-2, rtol=5e-2)

    # Case 2: ragged / non-128 shapes (masked last node tile + K / out padding).
    h2, w2, b2, ref2 = make_case(k2, 70, 48, 40)
    out2 = jax.block_until_ready(node_apply(h2, w2, b2, mxu_dtype=jnp.float32))
    assert out2.shape == (70, 40)
    assert jnp.allclose(out2, ref2, atol=1e-5, rtol=1e-5)
    out2_auto = jax.block_until_ready(node_apply(h2, w2, b2))
    assert jnp.allclose(out2_auto, ref2, atol=5e-2, rtol=5e-2)

    # Case 3: exercise the K-tiled accumulator path (forced K tile = 128, K grid = 2).
    h3, w3, b3, ref3 = make_case(k3, 40, 256, 96)
    out3 = jax.block_until_ready(
        node_apply(h3, w3, b3, mxu_dtype=jnp.float32, k_tile=128))
    assert out3.shape == (40, 96)
    assert jnp.allclose(out3, ref3, atol=1e-5, rtol=1e-5)

    print("KERNEL_OK")
</pallas_src>

<mosaic_0001>
module attributes {stable_mosaic.version = 11 : i64} {
  func.func @_single_k_kernel(%arg0: i32, %arg1: memref<16x128xf32, #tpu.memory_space<vmem>>, %arg2: memref<128x128xf32, #tpu.memory_space<vmem>>, %arg3: memref<1x128xf32, #tpu.memory_space<vmem>>, %arg4: memref<16x128xf32, #tpu.memory_space<vmem>>) attributes {dimension_semantics = [#tpu.dimension_semantics<parallel>], iteration_bounds = array<i64: 1>, scalar_prefetch = 0 : i64, scratch_operands = 0 : i64, tpu.core_type = #tpu.core_type<tc>, window_params = [{transform_indices = @transform_0, window_bounds = array<i64: 16, 128>}, {pipeline_mode = #tpu.pipeline_mode<synchronous>, transform_indices = @transform_1, window_bounds = array<i64: 128, 128>}, {pipeline_mode = #tpu.pipeline_mode<synchronous>, transform_indices = @transform_2, window_bounds = array<i64: 1, 128>}, {transform_indices = @transform_3, window_bounds = array<i64: 16, 128>}]} {
    %c0 = arith.constant 0 : index
    %c0_0 = arith.constant 0 : index
    %0 = vector.load %arg1[%c0, %c0_0] : memref<16x128xf32, #tpu.memory_space<vmem>>, vector<16x128xf32>
    %c0_1 = arith.constant 0 : index
    %c0_2 = arith.constant 0 : index
    %1 = vector.load %arg2[%c0_1, %c0_2] : memref<128x128xf32, #tpu.memory_space<vmem>>, vector<128x128xf32>
    %cst = arith.constant dense<0.000000e+00> : vector<16x128xf32>
    %2 = tpu.matmul %0, %1, %cst {dimension_numbers = #tpu.dot_dimension_numbers<[1], [0], [0], [1], [0, 0, 1, 1], [], []>} : vector<16x128xf32>, vector<128x128xf32>, vector<16x128xf32> -> vector<16x128xf32>
    %c0_3 = arith.constant 0 : index
    %c0_4 = arith.constant 0 : index
    %3 = vector.load %arg3[%c0_3, %c0_4] : memref<1x128xf32, #tpu.memory_space<vmem>>, vector<1x128xf32>
    %4 = vector.broadcast %3 : vector<1x128xf32> to vector<16x128xf32>
    %5 = arith.addf %2, %4 : vector<16x128xf32>
    %cst_5 = arith.constant 0.000000e+00 : f32
    %6 = vector.broadcast %cst_5 : f32 to vector<16x128xf32>
    %7 = arith.maximumf %5, %6 : vector<16x128xf32>
    %c0_6 = arith.constant 0 : index
    %c0_7 = arith.constant 0 : index
    %8 = vector.load %arg4[%c0_6, %c0_7] : memref<16x128xf32, #tpu.memory_space<vmem>>, vector<16x128xf32>
    tpu.vector_store %arg4[%c0_6, %c0_7], %7 {strides = array<i32>} : memref<16x128xf32, #tpu.memory_space<vmem>>, vector<16x128xf32>,
    return
  }
  func.func @transform_0(%arg0: i32) -> (i32, i32) {
    %c0_i32 = arith.constant 0 : i32
    %c0_i32_0 = arith.constant 0 : i32
    return %arg0, %c0_i32 : i32, i32
  }
  func.func @transform_1(%arg0: i32) -> (i32, i32) {
    %c0_i32 = arith.constant 0 : i32
    %c0_i32_0 = arith.constant 0 : i32
    %c0_i32_1 = arith.constant 0 : i32
    return %c0_i32, %c0_i32_0 : i32, i32
  }
  func.func @transform_2(%arg0: i32) -> (i32, i32) {
    %c0_i32 = arith.constant 0 : i32
    %c0_i32_0 = arith.constant 0 : i32
    %c0_i32_1 = arith.constant 0 : i32
    return %c0_i32, %c0_i32_0 : i32, i32
  }
  func.func @transform_3(%arg0: i32) -> (i32, i32) {
    %c0_i32 = arith.constant 0 : i32
    %c0_i32_0 = arith.constant 0 : i32
    return %arg0, %c0_i32 : i32, i32
  }
}

</mosaic_0001>

<llo_original>
// kernel: tpu_custom_call.1
$region0: #{tpu_custom_call.1}
  #allocation0 [shape = 'u32[]', space=smem, size = 0x4, offset = 0x4, fixed_abs, tag = 'smem constant byte address 0x4 - core index']
  #allocation1 [shape = 'u32[144,128]{1,0:T(1,128)}', space=vmem, size = 0x12000, scoped, tag = 'internal scratch']
  %s0 = inlined_call_operand.hbm [shape: f32[16,128], index: 0, kind: input, shape index: {}]
  %s1 = inlined_call_operand.hbm [shape: f32[128,128], index: 1, kind: input, shape index: {}]
  %s2 = inlined_call_operand.vmem [shape: f32[1,128], index: 2, kind: input, shape index: {}]
  %s3 = inlined_call_operand.hbm [shape: f32[16,128], index: 3, kind: output, shape index: {}]
  %s4 = sld [smem:[#allocation0]]
  $region30: #{tpu_custom_call.1} parent=0
    _
  %s6 = ssub.s32 1, %s4
  %s7 = scalar_select 0, %s6, %s4
  $region1: #{tpu_custom_call.1} parent=0
    #allocation2 [shape = 'u8[8192]{0}', space=vmem, size = 0x2000, scoped, tag = 'input window, operand 0, single buffered']
    #allocation3 [shape = 's32[1]{0}', space=sflag, size = 0x4, scoped, tag = 'scoped memory for tpu_custom_call.1']
    #allocation4 [shape = 's32[1]{0}', space=sflag, size = 0x4, scoped, tag = 'scoped memory for tpu_custom_call.1']
    #allocation5 [shape = 'u8[65536]{0}', space=vmem, size = 0x10000, scoped, tag = 'input window, operand 1, single buffered']
    #allocation6 [shape = 's32[1]{0}', space=sflag, size = 0x4, scoped, tag = 'scoped memory for tpu_custom_call.1']
    #allocation7 [shape = 'u8[8192]{0}', space=vmem, size = 0x2000, scoped, tag = 'output window, operand 0, single buffered']
    %8 = vsyncpa [#allocation3], 0
    %9 = vsyncpa [#allocation6], 0
    %10 = vsyncpa [#allocation4], 0
    // Predicated region
    $region2: #{tpu_custom_call.1} parent=1 // pred_check
      _
    $region3: #{tpu_custom_call.1} parent=1 // pred_check_branch
      %12 = sbr.rel (0) target = $region5
    $region4: #{tpu_custom_call.1} parent=1 // pred_region
      %s14 = ssub.s32 256, 256
      %15 = vsyncadd [#allocation3], %s14
      %s16 = sshll.u32 [#allocation2], 4
      %s17 = int_to_ptr.vmem [resolvable:$true] %s16
      %22 = dma.hbm_to_vmem [thread:$0]  %s0, 256, %s17, [#allocation3], 128, 128, 8
    $region5: #{tpu_custom_call.1} parent=1 // pred_fallthru
      _
    // Predicated region
    $region6: #{tpu_custom_call.1} parent=1 // pred_check
      _
    $region7: #{tpu_custom_call.1} parent=1 // pred_check_branch
      %24 = sbr.rel (0) target = $region9
    $region8: #{tpu_custom_call.1} parent=1 // pred_region
      %s26 = ssub.s32 2048, 2048
      %27 = vsyncadd [#allocation6], %s26
      %s28 = sshll.u32 [#allocation5], 4
      %s29 = int_to_ptr.vmem [resolvable:$true] %s28
      %34 = dma.hbm_to_vmem [thread:$0]  %s1, 2048, %s29, [#allocation6], 128, 128, 8
    $region9: #{tpu_custom_call.1} parent=1 // pred_fallthru
      _
    // Predicated region
    $region10: #{tpu_custom_call.1} parent=1 // pred_check
      _
    $region11: #{tpu_custom_call.1} parent=1 // pred_check_branch
      %36 = sbr.rel (0) target = $region13
    $region12: #{tpu_custom_call.1} parent=1 // pred_region
      _
    $region13: #{tpu_custom_call.1} parent=1 // pred_fallthru
      _
    // Predicated region
    $region14: #{tpu_custom_call.1} parent=1 // pred_check
      _
    $region15: #{tpu_custom_call.1} parent=1 // pred_check_branch
      %38 = sbr.rel (0) target = $region17
    $region16: #{tpu_custom_call.1} parent=1 // pred_region
      %39 = dma.done [#allocation3], 256
    $region17: #{tpu_custom_call.1} parent=1 // pred_fallthru
      _
    // Predicated region
    $region18: #{tpu_custom_call.1} parent=1 // pred_check
      _
    $region19: #{tpu_custom_call.1} parent=1 // pred_check_branch
      %41 = sbr.rel (0) target = $region21
    $region20: #{tpu_custom_call.1} parent=1 // pred_region
      %42 = dma.done [#allocation6], 2048
    $region21: #{tpu_custom_call.1} parent=1 // pred_fallthru
      _
    %v43 = vld [vmem:[#allocation2] sm:$0xff]
    %v44 = vld [vmem:[#allocation2 + $0x8] sm:$0xff]
    %v45 = vld [vmem:[#allocation5] sm:$0xff]
    %v46 = vld [vmem:[#allocation5 + $0x8] sm:$0xff]
    %v47 = vld [vmem:[#allocation5 + $0x10] sm:$0xff]
    %v48 = vld [vmem:[#allocation5 + $0x18] sm:$0xff]
    %v49 = vld [vmem:[#allocation5 + $0x20] sm:$0xff]
    %v50 = vld [vmem:[#allocation5 + $0x28] sm:$0xff]
    %v51 = vld [vmem:[#allocation5 + $0x30] sm:$0xff]
    %v52 = vld [vmem:[#allocation5 + $0x38] sm:$0xff]
    %v53 = vld [vmem:[#allocation5 + $0x40] sm:$0xff]
    %v54 = vld [vmem:[#allocation5 + $0x48] sm:$0xff]
    %v55 = vld [vmem:[#allocation5 + $0x50] sm:$0xff]
    %v56 = vld [vmem:[#allocation5 + $0x58] sm:$0xff]
    %v57 = vld [vmem:[#allocation5 + $0x60] sm:$0xff]
    %v58 = vld [vmem:[#allocation5 + $0x68] sm:$0xff]
    %v59 = vld [vmem:[#allocation5 + $0x70] sm:$0xff]
    %v60 = vld [vmem:[#allocation5 + $0x78] sm:$0xff]
    %v61 = vld [vmem:[%s2] sm:$0x1]
    %v63 = vlaneseq
    %v64 = vshrl.u32 %v63, 7
    %v65 = vsub.s32 0, %v64
    %v66 = vrot.slane %v61, %v65
    %68 = vmatprep.subr.mxu0 0.0
    %69 = vmatpush1.msra.mxu0 %v45
    %70 = vmatprep.subr.mxu0 0.0
    %71 = vmatpush1.msra.mxu0 %v46
    %72 = vmatprep.subr.mxu0 0.0
    %73 = vmatpush1.msra.mxu0 %v47
    %74 = vmatprep.subr.mxu0 0.0
    %75 = vmatpush1.msra.mxu0 %v48
    %76 = vmatprep.subr.mxu0 0.0
    %77 = vmatpush1.msra.mxu0 %v49
    %78 = vmatprep.subr.mxu0 0.0
    %79 = vmatpush1.msra.mxu0 %v50
    %80 = vmatprep.subr.mxu0 0.0
    %81 = vmatpush1.msra.mxu0 %v51
    %82 = vmatprep.subr.mxu0 0.0
    %83 = vmatpush1.msra.mxu0 %v52
    %84 = vmatprep.subr.mxu0 0.0
    %85 = vmatpush1.msra.mxu0 %v53
    %86 = vmatprep.subr.mxu0 0.0
    %87 = vmatpush1.msra.mxu0 %v54
    %88 = vmatprep.subr.mxu0 0.0
    %89 = vmatpush1.msra.mxu0 %v55
    %90 = vmatprep.subr.mxu0 0.0
    %91 = vmatpush1.msra.mxu0 %v56
    %92 = vmatprep.subr.mxu0 0.0
    %93 = vmatpush1.msra.mxu0 %v57
    %94 = vmatprep.subr.mxu0 0.0
    %95 = vmatpush1.msra.mxu0 %v58
    %96 = vmatprep.subr.mxu0 0.0
    %97 = vmatpush1.msra.mxu0 %v59
    %98 = vmatprep.subr.mxu0 0.0
    %99 = vmatpush1.msra.mxu0 %v60
    %100 = vmatprep.subr.mxu0 0.0
    %101 = vmatpush1.msra.mxu0 0.0
    %102 = vmatprep.subr.mxu0 0.0
    %103 = vmatpush1.msra.mxu0 0.0
    %104 = vmatprep.subr.mxu0 0.0
    %105 = vmatpush1.msra.mxu0 0.0
    %106 = vmatprep.subr.mxu0 0.0
    %107 = vmatpush1.msra.mxu0 0.0
    %108 = vmatprep.subr.mxu0 0.0
    %109 = vmatpush1.msra.mxu0 0.0
    %110 = vmatprep.subr.mxu0 0.0
    %111 = vmatpush1.msra.mxu0 0.0
    %112 = vmatprep.subr.mxu0 0.0
    %113 = vmatpush1.msra.mxu0 0.0
    %114 = vmatprep.subr.mxu0 0.0
    %115 = vmatpush1.msra.mxu0 0.0
    %116 = vmatprep.subr.mxu0 0.0
    %117 = vmatpush1.msra.mxu0 0.0
    %118 = vmatprep.subr.mxu0 0.0
    %119 = vmatpush1.msra.mxu0 0.0
    %120 = vmatprep.subr.mxu0 0.0
    %121 = vmatpush1.msra.mxu0 0.0
    %122 = vmatprep.subr.mxu0 0.0
    %123 = vmatpush1.msra.mxu0 0.0
    %124 = vmatprep.subr.mxu0 0.0
    %125 = vmatpush1.msra.mxu0 0.0
    %126 = vmatprep.subr.mxu0 0.0
    %127 = vmatpush1.msra.mxu0 0.0
    %128 = vmatprep.subr.mxu0 0.0
    %129 = vmatpush1.msra.mxu0 0.0
    %130 = vmatprep.subr.mxu0 0.0
    %131 = vmatpush1.msra.mxu0 0.0
    %132 = vmatprep.mubr.f32.mxu0 0.0
    %133 = vmatmul.mubr.f32.gmra.mrb[0].mxu0 %v43
    %v134 = vpop.f32.mrb[0].mxu0
    %v135 = vadd.f32 %v66, %v134
    %v136 = vpop.f32.mrb[0].mxu0
    %137 = vmatprep.mubr.f32.mxu0 0.0
    %138 = vmatmul.mubr.f32.gmra.mrb[0].mxu0 %v44
    %v139 = vpop.f32.mrb[0].mxu0
    %v140 = vadd.f32 %v66, %v139
    %v141 = vpop.f32.mrb[0].mxu0
    %142 = vdwg.mxu0
    %v143 = vmax.f32 %v135, 0.0
    %v144 = vmax.f32 %v140, 0.0
    %145 = vst [vmem:[#allocation7] sm:$0xff] %v143
    %146 = vst [vmem:[#allocation7 + $0x8] sm:$0xff] %v144
    // Predicated region
    $region22: #{tpu_custom_call.1} parent=1 // pred_check
      _
    $region23: #{tpu_custom_call.1} parent=1 // pred_check_branch
      %148 = sbr.rel (0) target = $region25
    $region24: #{tpu_custom_call.1} parent=1 // pred_region
      %s150 = ssub.s32 256, 256
      %151 = vsyncadd [#allocation4], %s150
      %s152 = sshll.u32 [#allocation7], 4
      %s153 = int_to_ptr.vmem [resolvable:$true] %s152
      %158 = dma.vmem_to_hbm [thread:$0]  %s153, 256, %s3, [#allocation4], 128, 128, 8
    $region25: #{tpu_custom_call.1} parent=1 // pred_fallthru
      _
    // Predicated region
    $region26: #{tpu_custom_call.1} parent=1 // pred_check
      _
    $region27: #{tpu_custom_call.1} parent=1 // pred_check_branch
      %160 = sbr.rel (0) target = $region29
    $region28: #{tpu_custom_call.1} parent=1 // pred_region
      %161 = dma.done [#allocation4], 256
    $region29: #{tpu_custom_call.1} parent=1 // pred_fallthru
      _
    %162 = vsyncpa [#allocation3], 1
    %163 = vsyncpa [#allocation6], 1
    %164 = vsyncpa [#allocation4], 1

</llo_original>
